<compile_context>
chip_gen: v7x
topology: tpu7x:2x2x1
jax: 0.10.0
libtpu: 0.0.40
codegen_flags: <defaults>
</compile_context>

<pallas_src>
import math

import jax
import jax.numpy as jnp
from jax.experimental import pallas as pl
from jax.experimental.pallas import tpu as pltpu

SIGMA_MIN = 1e-6            # cfm_params.sigma_min
TRAINING_CFG_RATE = 0.2     # cfm_params.training_cfg_rate

LANE = 128                  # TPU lane width (last dim)
SUBLANE = 8                 # TPU sublane width (second-to-last dim)
MAX_ROW_TILE = 256          # frames per grid step (>=256-row MXU pushes when T allows)


def _round_up(x, m):
    return (x + m - 1) // m * m


# -----------------------------------------------------------------------------
# Fused kernel: one (batch, frame-tile) grid step.
# -----------------------------------------------------------------------------
def _masked_diff_kernel(t_ref, cfg_ref, len_ref,          # SMEM (B,) scalars
                        src_ref, x1_ref, z_ref,            # (1, TM, Dp)/(1, TM, Cp)
                        w_enc_ref, b_enc_ref,              # (Dp, Cp), (1, Cp)
                        w_est_ref, b_est_ref,              # (2*Cp, Cp), (1, Cp)
                        num_ref, den_ref):                 # (1, 1, 1) per-batch partials
    b = pl.program_id(0)
    ti = pl.program_id(1)
    tm = src_ref.shape[1]

    # Scalar reads (SMEM) up front, off the vector path.
    t = t_ref[b]                      # cosine-scheduled timestep for this batch elem
    cfg = cfg_ref[b]                  # 1.0 keep condition / 0.0 drop (CFG dropout)
    n_valid = len_ref[b]              # valid frame count

    @pl.when(ti == 0)
    def _():
        num_ref[...] = jnp.zeros_like(num_ref)
        den_ref[...] = jnp.zeros_like(den_ref)

    src = src_ref[0]                  # (TM, Dp) noisy codec features
    x1 = x1_ref[0]                    # (TM, Cp) target mel frames (channels-last)
    z = z_ref[0]                      # (TM, Cp) gaussian noise

    # Fused encoder stand-in + CFG dropout:  mu = tanh(src @ W_enc + b_enc) * cfg
    # TODO(synk): real encoder is a Conformer and length_regulator resamples to the
    # mel frame rate; here encoder = linear+tanh and the regulator is identity.
    mu = jnp.tanh(
        jnp.dot(src, w_enc_ref[...], preferred_element_type=jnp.float32)
        + b_enc_ref[...]) * cfg

    # OT conditional flow:  y = (1 - (1-sigma) t) z + t x1 ;  u = x1 - (1-sigma) z
    y = (1.0 - (1.0 - SIGMA_MIN) * t) * z + t * x1
    u = x1 - (1.0 - SIGMA_MIN) * z

    # Fused estimator (linear surrogate of the U-Net decoder):
    #   pred = [y, mu] @ [W_y; W_mu] + b   — single MXU pass, 2*Cp contraction.
    ym = jnp.concatenate([y, mu], axis=-1)                     # (TM, 2*Cp)
    pred = jnp.dot(ym, w_est_ref[...],
                   preferred_element_type=jnp.float32) + b_est_ref[...]

    # Pad mask computed in-kernel from the sequence length (no HBM mask stream).
    frame = jax.lax.broadcasted_iota(jnp.int32, (tm, 1), 0) + ti * tm
    m = (frame < n_valid).astype(jnp.float32)                  # (TM, 1)

    # Masked L1, reduction='sum' (mask applied once, after the subtract).
    num_ref[...] += jnp.sum(jnp.abs(pred - u) * m)
    # Exact valid-frame count for this tile as a scalar (no vector reduce needed).
    den_ref[...] += jnp.clip(n_valid - ti * tm, 0, tm).astype(jnp.float32)


# -----------------------------------------------------------------------------
# Glue: full MaskedDiff.forward
# -----------------------------------------------------------------------------
def masked_diff_forward(params, batch, key):
    mel = batch['mel_spectrogram']                        # (B, 1, C, T) like torch
    lengths = batch['codec_feats_len'].astype(jnp.int32)  # (B,)
    src = batch['source_codec_feats']                     # (B, T, Din)

    # mel.squeeze(1) and mu = h.transpose(1,2) handled as channels-last plumbing.
    x1 = jnp.transpose(jnp.squeeze(mel, axis=1), (0, 2, 1))   # (B, T, C)
    B, T, C = x1.shape
    Din = src.shape[-1]

    # Lane-dense / sublane-aligned padded geometry.
    cp = _round_up(C, LANE)
    dp = _round_up(Din, LANE)
    tm = min(_round_up(T, SUBLANE), MAX_ROW_TILE)
    tp = _round_up(T, tm)
    nt = tp // tm

    # Randomness (matches torch compute_loss).
    k_t, k_z, k_cfg = jax.random.split(key, 3)
    t_raw = jax.random.uniform(k_t, (B,), dtype=jnp.float32)
    t_sched = 1.0 - jnp.cos(t_raw * 0.5 * math.pi)        # t_scheduler == 'cosine'
    z = jax.random.normal(k_z, (B, T, C), dtype=jnp.float32)
    cfg_keep = (jax.random.uniform(k_cfg, (B,)) > TRAINING_CFG_RATE).astype(jnp.float32)

    # Zero-pad activations/weights so padded lanes & frames contribute exactly 0.
    pad3 = lambda a, t_to, c_to: jnp.pad(
        a, ((0, 0), (0, t_to - a.shape[1]), (0, c_to - a.shape[2])))
    pad2 = lambda a, r_to, c_to: jnp.pad(
        a, ((0, r_to - a.shape[0]), (0, c_to - a.shape[1])))

    x1_p = pad3(x1, tp, cp)
    z_p = pad3(z, tp, cp)
    src_p = pad3(src, tp, dp)

    w_enc = pad2(params['w_enc'], dp, cp)
    b_enc = pad2(params['b_enc'][None, :], 1, cp)
    # Pre-concatenated estimator weights: rows = [y-channels ; mu-channels].
    w_est = jnp.concatenate([pad2(params['w_y'], cp, cp),
                             pad2(params['w_mu'], cp, cp)], axis=0)   # (2*cp, cp)
    b_est = pad2(params['b_est'][None, :], 1, cp)

    num, den = pl.pallas_call(
        _masked_diff_kernel,
        out_shape=(jax.ShapeDtypeStruct((B, 1, 1), jnp.float32),
                   jax.ShapeDtypeStruct((B, 1, 1), jnp.float32)),
        grid=(B, nt),
        in_specs=[
            pl.BlockSpec(memory_space=pltpu.MemorySpace.SMEM),       # t (per batch)
            pl.BlockSpec(memory_space=pltpu.MemorySpace.SMEM),       # cfg keep (per batch)
            pl.BlockSpec(memory_space=pltpu.MemorySpace.SMEM),       # lengths (per batch)
            pl.BlockSpec((1, tm, dp), lambda b, i: (b, i, 0)),       # src tile
            pl.BlockSpec((1, tm, cp), lambda b, i: (b, i, 0)),       # mel tile
            pl.BlockSpec((1, tm, cp), lambda b, i: (b, i, 0)),       # noise tile
            pl.BlockSpec((dp, cp), lambda b, i: (0, 0)),             # w_enc (resident)
            pl.BlockSpec((1, cp), lambda b, i: (0, 0)),              # b_enc (resident)
            pl.BlockSpec((2 * cp, cp), lambda b, i: (0, 0)),         # w_est (resident)
            pl.BlockSpec((1, cp), lambda b, i: (0, 0)),              # b_est (resident)
        ],
        out_specs=(
            pl.BlockSpec((1, 1, 1), lambda b, i: (b, 0, 0)),         # per-batch |.| sum
            pl.BlockSpec((1, 1, 1), lambda b, i: (b, 0, 0)),         # per-batch mask sum
        ),
        compiler_params=pltpu.CompilerParams(
            dimension_semantics=("parallel", "arbitrary"),
            vmem_limit_bytes=48 * 1024 * 1024,
        ),
    )(t_sched, cfg_keep, lengths, src_p, x1_p, z_p, w_enc, b_enc, w_est, b_est)

    # Masked L1 'sum' normalization:  sum|pred - u| / (sum(mask) * C)
    loss = jnp.sum(num) / (jnp.sum(den) * float(C))
    return {'loss': loss}


# -----------------------------------------------------------------------------
# Deterministic parameter init (synthetic; no checkpoint loading)
# -----------------------------------------------------------------------------
def init_params(key, din, c):
    k1, k2, k3 = jax.random.split(key, 3)
    return {
        'w_enc': 0.05 * jax.random.normal(k1, (din, c), dtype=jnp.float32),
        'b_enc': jnp.zeros((c,), dtype=jnp.float32),
        'w_y':   0.05 * jax.random.normal(k2, (c, c), dtype=jnp.float32),
        'w_mu':  0.05 * jax.random.normal(k3, (c, c), dtype=jnp.float32),
        'b_est': jnp.zeros((c,), dtype=jnp.float32),
    }
    # TODO(synk): encoder_proj / linear_cond_pitch are declared in __init__ but
    # never used in forward (conds is None), so they are omitted here.


if __name__ == "__main__":
    B, T, Din, C = 2, 16, 32, 16      # batch, frames, codec dim, mel channels

    root = jax.random.PRNGKey(0)
    k_mel, k_src, k_rng, k_par = jax.random.split(root, 4)

    batch = {
        'mel_spectrogram': jax.random.normal(k_mel, (B, 1, C, T), dtype=jnp.float32),
        'codec_feats_len': jnp.array([T, T - 4], dtype=jnp.int32),
        'source_codec_feats': jax.random.normal(k_src, (B, T, Din), dtype=jnp.float32),
    }
    params = init_params(k_par, Din, C)

    out = masked_diff_forward(params, batch, k_rng)
    loss = jax.block_until_ready(out['loss'])
    assert loss.shape == () and bool(jnp.isfinite(loss))
    print("KERNEL_OK")
</pallas_src>

<mosaic_0001>
module attributes {stable_mosaic.version = 11 : i64} {
  func.func @_masked_diff_kernel(%arg0: i32, %arg1: i32, %arg2: memref<2xf32, #tpu.memory_space<smem>>, %arg3: memref<2xf32, #tpu.memory_space<smem>>, %arg4: memref<2xi32, #tpu.memory_space<smem>>, %arg5: memref<1x16x128xf32, #tpu.memory_space<vmem>>, %arg6: memref<1x16x128xf32, #tpu.memory_space<vmem>>, %arg7: memref<1x16x128xf32, #tpu.memory_space<vmem>>, %arg8: memref<128x128xf32, #tpu.memory_space<vmem>>, %arg9: memref<1x128xf32, #tpu.memory_space<vmem>>, %arg10: memref<256x128xf32, #tpu.memory_space<vmem>>, %arg11: memref<1x128xf32, #tpu.memory_space<vmem>>, %arg12: memref<1x1x1xf32, #tpu.memory_space<vmem>>, %arg13: memref<1x1x1xf32, #tpu.memory_space<vmem>>) attributes {dimension_semantics = [#tpu.dimension_semantics<parallel>, #tpu.dimension_semantics<arbitrary>], iteration_bounds = array<i64: 2, 1>, scalar_prefetch = 0 : i64, scratch_operands = 0 : i64, tpu.core_type = #tpu.core_type<tc>, window_params = [{transform_indices = @transform_0, window_bounds = array<i64: 2>}, {transform_indices = @transform_1, window_bounds = array<i64: 2>}, {transform_indices = @transform_2, window_bounds = array<i64: 2>}, {transform_indices = @transform_3, window_bounds = array<i64: 1, 16, 128>}, {transform_indices = @transform_4, window_bounds = array<i64: 1, 16, 128>}, {transform_indices = @transform_5, window_bounds = array<i64: 1, 16, 128>}, {pipeline_mode = #tpu.pipeline_mode<synchronous>, transform_indices = @transform_6, window_bounds = array<i64: 128, 128>}, {pipeline_mode = #tpu.pipeline_mode<synchronous>, transform_indices = @transform_7, window_bounds = array<i64: 1, 128>}, {pipeline_mode = #tpu.pipeline_mode<synchronous>, transform_indices = @transform_8, window_bounds = array<i64: 256, 128>}, {pipeline_mode = #tpu.pipeline_mode<synchronous>, transform_indices = @transform_9, window_bounds = array<i64: 1, 128>}, {transform_indices = @transform_10, window_bounds = array<i64: 1, 1, 1>}, {transform_indices = @transform_11, window_bounds = array<i64: 1, 1, 1>}]} {
    %0 = arith.index_cast %arg0 : i32 to index
    %1 = memref.load %arg2[%0] : memref<2xf32, #tpu.memory_space<smem>>
    %2 = arith.index_cast %arg0 : i32 to index
    %3 = memref.load %arg3[%2] : memref<2xf32, #tpu.memory_space<smem>>
    %4 = arith.index_cast %arg0 : i32 to index
    %5 = memref.load %arg4[%4] : memref<2xi32, #tpu.memory_space<smem>>
    %c0_i32 = arith.constant 0 : i32
    %6 = arith.cmpi eq, %arg1, %c0_i32 : i32
    %7 = arith.extui %6 : i1 to i32
    %c0_i32_0 = arith.constant 0 : i32
    %8 = arith.cmpi ne, %7, %c0_i32_0 : i32
    scf.if %8 {
      %cst_37 = arith.constant 0.000000e+00 : f32
      %68 = vector.broadcast %cst_37 : f32 to vector<1x1x1xf32>
      %c0_38 = arith.constant 0 : index
      %c0_39 = arith.constant 0 : index
      %c0_40 = arith.constant 0 : index
      %69 = vector.load %arg12[%c0_38, %c0_39, %c0_40] : memref<1x1x1xf32, #tpu.memory_space<vmem>>, vector<1x1x1xf32>
      tpu.vector_store %arg12[%c0_38, %c0_39, %c0_40], %68 {strides = array<i32>} : memref<1x1x1xf32, #tpu.memory_space<vmem>>, vector<1x1x1xf32>,
      %cst_41 = arith.constant 0.000000e+00 : f32
      %70 = vector.broadcast %cst_41 : f32 to vector<1x1x1xf32>
      %c0_42 = arith.constant 0 : index
      %c0_43 = arith.constant 0 : index
      %c0_44 = arith.constant 0 : index
      %71 = vector.load %arg13[%c0_42, %c0_43, %c0_44] : memref<1x1x1xf32, #tpu.memory_space<vmem>>, vector<1x1x1xf32>
      tpu.vector_store %arg13[%c0_42, %c0_43, %c0_44], %70 {strides = array<i32>} : memref<1x1x1xf32, #tpu.memory_space<vmem>>, vector<1x1x1xf32>,
    } else {
    }
    %c0 = arith.constant 0 : index
    %c0_1 = arith.constant 0 : index
    %c0_2 = arith.constant 0 : index
    %9 = vector.load %arg5[%c0, %c0_1, %c0_2] : memref<1x16x128xf32, #tpu.memory_space<vmem>>, vector<1x16x128xf32>
    %10 = vector.shape_cast %9 : vector<1x16x128xf32> to vector<16x128xf32>
    %c0_3 = arith.constant 0 : index
    %c0_4 = arith.constant 0 : index
    %c0_5 = arith.constant 0 : index
    %11 = vector.load %arg6[%c0_3, %c0_4, %c0_5] : memref<1x16x128xf32, #tpu.memory_space<vmem>>, vector<1x16x128xf32>
    %12 = vector.shape_cast %11 : vector<1x16x128xf32> to vector<16x128xf32>
    %c0_6 = arith.constant 0 : index
    %c0_7 = arith.constant 0 : index
    %c0_8 = arith.constant 0 : index
    %13 = vector.load %arg7[%c0_6, %c0_7, %c0_8] : memref<1x16x128xf32, #tpu.memory_space<vmem>>, vector<1x16x128xf32>
    %14 = vector.shape_cast %13 : vector<1x16x128xf32> to vector<16x128xf32>
    %c0_9 = arith.constant 0 : index
    %c0_10 = arith.constant 0 : index
    %15 = vector.load %arg8[%c0_9, %c0_10] : memref<128x128xf32, #tpu.memory_space<vmem>>, vector<128x128xf32>
    %cst = arith.constant dense<0.000000e+00> : vector<16x128xf32>
    %16 = tpu.matmul %10, %15, %cst {dimension_numbers = #tpu.dot_dimension_numbers<[1], [0], [0], [1], [0, 0, 1, 1], [], []>} : vector<16x128xf32>, vector<128x128xf32>, vector<16x128xf32> -> vector<16x128xf32>
    %c0_11 = arith.constant 0 : index
    %c0_12 = arith.constant 0 : index
    %17 = vector.load %arg9[%c0_11, %c0_12] : memref<1x128xf32, #tpu.memory_space<vmem>>, vector<1x128xf32>
    %18 = vector.broadcast %17 : vector<1x128xf32> to vector<16x128xf32>
    %19 = arith.addf %16, %18 : vector<16x128xf32>
    %20 = math.tanh %19 : vector<16x128xf32>
    %21 = vector.broadcast %3 : f32 to vector<16x128xf32>
    %22 = arith.mulf %20, %21 : vector<16x128xf32>
    %cst_13 = arith.constant 0.999998986 : f32
    %23 = arith.mulf %cst_13, %1 : f32
    %cst_14 = arith.constant 1.000000e+00 : f32
    %24 = arith.subf %cst_14, %23 : f32
    %25 = vector.broadcast %24 : f32 to vector<16x128xf32>
    %26 = arith.mulf %25, %14 : vector<16x128xf32>
    %27 = vector.broadcast %1 : f32 to vector<16x128xf32>
    %28 = arith.mulf %27, %12 : vector<16x128xf32>
    %29 = arith.addf %26, %28 : vector<16x128xf32>
    %cst_15 = arith.constant 0.999998986 : f32
    %30 = vector.broadcast %cst_15 : f32 to vector<16x128xf32>
    %31 = arith.mulf %30, %14 : vector<16x128xf32>
    %32 = arith.subf %12, %31 : vector<16x128xf32>
    %33 = tpu.concatenate %29, %22 in 1 : vector<16x128xf32>, vector<16x128xf32> -> vector<16x256xf32>
    %c0_16 = arith.constant 0 : index
    %c0_17 = arith.constant 0 : index
    %34 = vector.load %arg10[%c0_16, %c0_17] : memref<256x128xf32, #tpu.memory_space<vmem>>, vector<256x128xf32>
    %cst_18 = arith.constant dense<0.000000e+00> : vector<16x128xf32>
    %35 = tpu.matmul %33, %34, %cst_18 {dimension_numbers = #tpu.dot_dimension_numbers<[1], [0], [0], [1], [0, 0, 1, 1], [], []>} : vector<16x256xf32>, vector<256x128xf32>, vector<16x128xf32> -> vector<16x128xf32>
    %c0_19 = arith.constant 0 : index
    %c0_20 = arith.constant 0 : index
    %36 = vector.load %arg11[%c0_19, %c0_20] : memref<1x128xf32, #tpu.memory_space<vmem>>, vector<1x128xf32>
    %37 = vector.broadcast %36 : vector<1x128xf32> to vector<16x128xf32>
    %38 = arith.addf %35, %37 : vector<16x128xf32>
    %39 = tpu.iota {dimensions = array<i32: 0>} : vector<16x1xi32>
    %c16_i32 = arith.constant 16 : i32
    %40 = arith.muli %arg1, %c16_i32 : i32
    %41 = vector.broadcast %40 : i32 to vector<16x1xi32>
    %42 = arith.addi %39, %41 : vector<16x1xi32>
    %43 = vector.broadcast %5 : i32 to vector<16x1xi32>
    %44 = arith.cmpi slt, %42, %43 : vector<16x1xi32>
    %45 = arith.extui %44 : vector<16x1xi1> to vector<16x1xi32>
    %46 = arith.sitofp %45 : vector<16x1xi32> to vector<16x1xf32>
    %c0_21 = arith.constant 0 : index
    %c0_22 = arith.constant 0 : index
    %c0_23 = arith.constant 0 : index
    %47 = vector.load %arg12[%c0_21, %c0_22, %c0_23] : memref<1x1x1xf32, #tpu.memory_space<vmem>>, vector<1x1x1xf32>
    %48 = arith.subf %38, %32 : vector<16x128xf32>
    %49 = math.absf %48 : vector<16x128xf32>
    %50 = vector.broadcast %46 : vector<16x1xf32> to vector<16x128xf32>
    %51 = arith.mulf %49, %50 : vector<16x128xf32>
    %52 = vector.shape_cast %51 : vector<16x128xf32> to vector<1x16x128xf32>
    %cst_24 = arith.constant dense<0.000000e+00> : vector<1xf32>
    %53 = vector.multi_reduction <add>, %52, %cst_24 [1, 2] : vector<1x16x128xf32> to vector<1xf32>
    %54 = vector.shape_cast %53 : vector<1xf32> to vector<1x1x1xf32>
    %55 = vector.extract %54[0, 0, 0] : f32 from vector<1x1x1xf32>
    %56 = vector.broadcast %55 : f32 to vector<1x1x1xf32>
    %57 = arith.addf %47, %56 : vector<1x1x1xf32>
    %c0_25 = arith.constant 0 : index
    %c0_26 = arith.constant 0 : index
    %c0_27 = arith.constant 0 : index
    %58 = vector.load %arg12[%c0_25, %c0_26, %c0_27] : memref<1x1x1xf32, #tpu.memory_space<vmem>>, vector<1x1x1xf32>
    tpu.vector_store %arg12[%c0_25, %c0_26, %c0_27], %57 {strides = array<i32>} : memref<1x1x1xf32, #tpu.memory_space<vmem>>, vector<1x1x1xf32>,
    %c0_28 = arith.constant 0 : index
    %c0_29 = arith.constant 0 : index
    %c0_30 = arith.constant 0 : index
    %59 = vector.load %arg13[%c0_28, %c0_29, %c0_30] : memref<1x1x1xf32, #tpu.memory_space<vmem>>, vector<1x1x1xf32>
    %c16_i32_31 = arith.constant 16 : i32
    %60 = arith.muli %arg1, %c16_i32_31 : i32
    %61 = arith.subi %5, %60 : i32
    %c0_i32_32 = arith.constant 0 : i32
    %c16_i32_33 = arith.constant 16 : i32
    %62 = arith.maxsi %c0_i32_32, %61 : i32
    %63 = arith.minsi %c16_i32_33, %62 : i32
    %64 = arith.sitofp %63 : i32 to f32
    %65 = vector.broadcast %64 : f32 to vector<1x1x1xf32>
    %66 = arith.addf %59, %65 : vector<1x1x1xf32>
    %c0_34 = arith.constant 0 : index
    %c0_35 = arith.constant 0 : index
    %c0_36 = arith.constant 0 : index
    %67 = vector.load %arg13[%c0_34, %c0_35, %c0_36] : memref<1x1x1xf32, #tpu.memory_space<vmem>>, vector<1x1x1xf32>
    tpu.vector_store %arg13[%c0_34, %c0_35, %c0_36], %66 {strides = array<i32>} : memref<1x1x1xf32, #tpu.memory_space<vmem>>, vector<1x1x1xf32>,
    return
  }
  func.func @transform_0(%arg0: i32, %arg1: i32) -> i32 {
    %c0_i32 = arith.constant 0 : i32
    %c0_i32_0 = arith.constant 0 : i32
    return %c0_i32 : i32
  }
  func.func @transform_1(%arg0: i32, %arg1: i32) -> i32 {
    %c0_i32 = arith.constant 0 : i32
    %c0_i32_0 = arith.constant 0 : i32
    return %c0_i32 : i32
  }
  func.func @transform_2(%arg0: i32, %arg1: i32) -> i32 {
    %c0_i32 = arith.constant 0 : i32
    %c0_i32_0 = arith.constant 0 : i32
    return %c0_i32 : i32
  }
  func.func @transform_3(%arg0: i32, %arg1: i32) -> (i32, i32, i32) {
    %c0_i32 = arith.constant 0 : i32
    %c0_i32_0 = arith.constant 0 : i32
    return %arg0, %arg1, %c0_i32 : i32, i32, i32
  }
  func.func @transform_4(%arg0: i32, %arg1: i32) -> (i32, i32, i32) {
    %c0_i32 = arith.constant 0 : i32
    %c0_i32_0 = arith.constant 0 : i32
    return %arg0, %arg1, %c0_i32 : i32, i32, i32
  }
  func.func @transform_5(%arg0: i32, %arg1: i32) -> (i32, i32, i32) {
    %c0_i32 = arith.constant 0 : i32
    %c0_i32_0 = arith.constant 0 : i32
    return %arg0, %arg1, %c0_i32 : i32, i32, i32
  }
  func.func @transform_6(%arg0: i32, %arg1: i32) -> (i32, i32) {
    %c0_i32 = arith.constant 0 : i32
    %c0_i32_0 = arith.constant 0 : i32
    %c0_i32_1 = arith.constant 0 : i32
    return %c0_i32, %c0_i32_0 : i32, i32
  }
  func.func @transform_7(%arg0: i32, %arg1: i32) -> (i32, i32) {
    %c0_i32 = arith.constant 0 : i32
    %c0_i32_0 = arith.constant 0 : i32
    %c0_i32_1 = arith.constant 0 : i32
    return %c0_i32, %c0_i32_0 : i32, i32
  }
  func.func @transform_8(%arg0: i32, %arg1: i32) -> (i32, i32) {
    %c0_i32 = arith.constant 0 : i32
    %c0_i32_0 = arith.constant 0 : i32
    %c0_i32_1 = arith.constant 0 : i32
    return %c0_i32, %c0_i32_0 : i32, i32
  }
  func.func @transform_9(%arg0: i32, %arg1: i32) -> (i32, i32) {
    %c0_i32 = arith.constant 0 : i32
    %c0_i32_0 = arith.constant 0 : i32
    %c0_i32_1 = arith.constant 0 : i32
    return %c0_i32, %c0_i32_0 : i32, i32
  }
  func.func @transform_10(%arg0: i32, %arg1: i32) -> (i32, i32, i32) {
    %c0_i32 = arith.constant 0 : i32
    %c0_i32_0 = arith.constant 0 : i32
    %c0_i32_1 = arith.constant 0 : i32
    return %arg0, %c0_i32, %c0_i32_0 : i32, i32, i32
  }
  func.func @transform_11(%arg0: i32, %arg1: i32) -> (i32, i32, i32) {
    %c0_i32 = arith.constant 0 : i32
    %c0_i32_0 = arith.constant 0 : i32
    %c0_i32_1 = arith.constant 0 : i32
    return %arg0, %c0_i32, %c0_i32_0 : i32, i32, i32
  }
}

</mosaic_0001>

<llo_original>
// kernel: tpu_custom_call.1
$region0: #{tpu_custom_call.1}
  #allocation0 [shape = 'u32[]', space=smem, size = 0x4, offset = 0x4, fixed_abs, tag = 'smem constant byte address 0x4 - core index']
  #allocation1 [shape = 'u32[144,128]{1,0:T(1,128)}', space=vmem, size = 0x12000, scoped, tag = 'internal scratch']
  %s0 = inlined_call_operand.hbm [shape: f32[2], index: 0, kind: input, shape index: {}]
  %s1 = inlined_call_operand.vmem [shape: f32[2], index: 1, kind: input, shape index: {}]
  %s2 = inlined_call_operand.vmem [shape: s32[2], index: 2, kind: input, shape index: {}]
  %s3 = inlined_call_operand.hbm [shape: f32[2,16,128], index: 3, kind: input, shape index: {}]
  %s4 = inlined_call_operand.hbm [shape: f32[2,16,128], index: 4, kind: input, shape index: {}]
  %s5 = inlined_call_operand.hbm [shape: f32[2,16,128], index: 5, kind: input, shape index: {}]
  %s6 = inlined_call_operand.hbm [shape: f32[128,128], index: 6, kind: input, shape index: {}]
  %s7 = inlined_call_operand.vmem [shape: f32[1,128], index: 7, kind: input, shape index: {}]
  %s8 = inlined_call_operand.hbm [shape: f32[256,128], index: 8, kind: input, shape index: {}]
  %s9 = inlined_call_operand.vmem [shape: f32[1,128], index: 9, kind: input, shape index: {}]
  %s10 = inlined_call_operand.vmem [shape: f32[2,1,1], index: 10, kind: output, shape index: {0}]
  %s11 = inlined_call_operand.vmem [shape: f32[2,1,1], index: 11, kind: output, shape index: {1}]
  %12 = xla_tuple %s10, %s11
  %s13 = sld [smem:[#allocation0]]
  $region117: #{tpu_custom_call.1} parent=0
    _
  %s15 = ssub.s32 1, %s13
  %s16 = scalar_select 0, %s15, %s13
  $region1: #{tpu_custom_call.1} parent=0
    #allocation2 [shape = 'u8[512]{0}', space=smem, size = 0x200, scoped, tag = 'input window, operand 0, single buffered']
    #allocation3 [shape = 's32[2]{0}', space=sflag, size = 0x8, scoped, tag = 'scoped memory for tpu_custom_call.1']
    #allocation4 [shape = 's32[2]{0}', space=sflag, size = 0x8, scoped, tag = 'scoped memory for tpu_custom_call.1']
    #allocation5 [shape = 's32[2]{0}', space=sflag, size = 0x8, scoped, tag = 'scoped memory for tpu_custom_call.1']
    #allocation6 [shape = 'u8[512]{0}', space=smem, size = 0x200, scoped, tag = 'input window, operand 1, single buffered']
    #allocation7 [shape = 'u8[512]{0}', space=smem, size = 0x200, scoped, tag = 'input window, operand 2, single buffered']
    #allocation8 [shape = 's32[1]{0}', space=sflag, size = 0x4, scoped, tag = 'scoped memory for tpu_custom_call.1']
    #allocation9 [shape = 'u8[16384]{0}', space=vmem, size = 0x4000, scoped, tag = 'input window, operand 3']
    #allocation10 [shape = 'u8[16384]{0}', space=vmem, size = 0x4000, scoped, tag = 'input window, operand 4']
    #allocation11 [shape = 's32[2]{0}', space=sflag, size = 0x8, scoped, tag = 'scoped memory for tpu_custom_call.1']
    #allocation12 [shape = 'u8[16384]{0}', space=vmem, size = 0x4000, scoped, tag = 'input window, operand 5']
    #allocation13 [shape = 'u8[65536]{0}', space=vmem, size = 0x10000, scoped, tag = 'input window, operand 6, single buffered']
    #allocation14 [shape = 's32[1]{0}', space=sflag, size = 0x4, scoped, tag = 'scoped memory for tpu_custom_call.1']
    #allocation15 [shape = 'u8[131072]{0}', space=vmem, size = 0x20000, scoped, tag = 'input window, operand 8, single buffered']
    %17 = vsyncpa [#allocation4], 0
    %18 = vsyncpa [#allocation5], 0
    %19 = vsyncpa [#allocation8], 0
    %20 = vsyncpa [#allocation3], 0
    %s21 = scalar_lea.sflag [#allocation3], 1
    %22 = vsyncpa %s21, 0
    %23 = vsyncpa [#allocation11], 0
    %s24 = scalar_lea.sflag [#allocation11], 1
    %25 = vsyncpa %s24, 0
    %26 = vsyncpa [#allocation14], 0
    loop: start=0, step=1, limit=4
    $region2: #{tpu_custom_call.1} parent=1 // loop_pre_header
      _
    $region3: #{tpu_custom_call.1} parent=1 // loop_header
      %s28 = sphi 0, %s32
      %p29 = scmp.ge.s32.totalorder %s28, 4
      %s35 = sphi 0, %s47
      %s36 = sphi 0, %s43
      %s37 = sphi 0, %s35
      %s38 = sphi 0, %s36
      %s39 = sphi 0, %s37
      %s40 = sphi 0, %s38
      %s48 = sphi 0, %s48
      %s50 = sphi 0, %s48
      %s51 = sphi 0, %s50
      %s65 = sphi 0, %s51
      %s69 = sphi 0, %s69
      %s71 = sphi 0, %s69
      %s72 = sphi 0, %s71
      %s86 = sphi 0, %s72
      %s90 = sphi 0, %s90
      %s92 = sphi 0, %s90
      %s93 = sphi 0, %s92
      %s107 = sphi 0, %s93
      %s115 = sphi 0, %s117
      %s118 = sphi 0, %s115
      %s119 = sphi 0, %s118
      %s135 = sphi 0, %s119
      %s143 = sphi 0, %s145
      %s146 = sphi 0, %s143
      %s147 = sphi 0, %s146
      %s163 = sphi 0, %s147
      %s171 = sphi 0, %s173
      %s174 = sphi 0, %s171
      %s175 = sphi 0, %s174
      %s191 = sphi 0, %s175
      %s195 = sphi 0, %s195
      %s197 = sphi 0, %s195
      %s198 = sphi 0, %s197
      %s212 = sphi 0, %s198
      %s216 = sphi 0, %s216
      %s218 = sphi 0, %s216
      %s219 = sphi 0, %s218
      %s233 = sphi 0, %s219
      %s237 = sphi 0, %s237
      %s239 = sphi 0, %s237
      %s240 = sphi 0, %s239
      %s254 = sphi 0, %s240
      %s258 = sphi 0, %s258
      %s260 = sphi 0, %s258
      %s261 = sphi 0, %s260
      %s275 = sphi 0, %s261
      %s281 = sphi 0, %s283
      %s284 = sphi 0, %s281
      %s285 = sphi 0, %s284
      %s301 = sphi 0, %s285
      %s307 = sphi 0, %s309
      %s310 = sphi 0, %s307
      %s311 = sphi 0, %s310
      %s327 = sphi 0, %s311
    $region4: #{tpu_custom_call.1} parent=1 // loop_header_branch
      %31 = sbr.rel (%p29) target = $region8
    $region5: #{tpu_custom_call.1} parent=1 // loop_body
      %s33 = ssub.s32 %s28, 1
      %s34 = ssub.s32 %s28, 2
      %s41 = sadd.s32 1, %s36
      %p42 = scmp.ge.s32.totalorder %s41, 1
      %s43 = scalar_select %p42, 0, %s41
      %s44 = sadd.s32 1, %s35
      %s45 = scalar_select %p42, %s44, %s35
      %p46 = scmp.ge.s32.totalorder %s45, 2
      %s47 = scalar_select %p46, 0, %s45
      %s49 = sadd.s32 %s48, 1
      %p52 = scmp.eq.s32.totalorder %s28, 1
      %p53 = scmp.ne.s32.totalorder %s48, %s50
      %p54 = scmp.eq.s32.totalorder %s28, 0
      %p55 = por %p53, %p54
      %p56 = scmp.ne.s32.totalorder %s48, %s50
      %p57 = scmp.eq.s32.totalorder %s33, 1
      %p58 = por %p56, %p57
      %p59 = scmp.ne.s32.totalorder %s50, %s51
      %p60 = scmp.eq.s32.totalorder %s33, 0
      %p61 = por %p59, %p60
      %p62 = scmp.ne.s32.totalorder %s50, %s51
      %p63 = scmp.eq.s32.totalorder %s34, 1
      %p64 = por %p62, %p63
      %p66 = scmp.ne.s32.totalorder %s51, %s65
      %p67 = scmp.eq.s32.totalorder %s34, 0
      %p68 = por %p66, %p67
      %s70 = sadd.s32 %s69, 1
      %p73 = scmp.eq.s32.totalorder %s28, 1
      %p74 = scmp.ne.s32.totalorder %s69, %s71
      %p75 = scmp.eq.s32.totalorder %s28, 0
      %p76 = por %p74, %p75
      %p77 = scmp.ne.s32.totalorder %s69, %s71
      %p78 = scmp.eq.s32.totalorder %s33, 1
      %p79 = por %p77, %p78
      %p80 = scmp.ne.s32.totalorder %s71, %s72
      %p81 = scmp.eq.s32.totalorder %s33, 0
      %p82 = por %p80, %p81
      %p83 = scmp.ne.s32.totalorder %s71, %s72
      %p84 = scmp.eq.s32.totalorder %s34, 1
      %p85 = por %p83, %p84
      %p87 = scmp.ne.s32.totalorder %s72, %s86
      %p88 = scmp.eq.s32.totalorder %s34, 0
      %p89 = por %p87, %p88
      %s91 = sadd.s32 %s90, 1
      %p94 = scmp.eq.s32.totalorder %s28, 1
      %p95 = scmp.ne.s32.totalorder %s90, %s92
      %p96 = scmp.eq.s32.totalorder %s28, 0
      %p97 = por %p95, %p96
      %p98 = scmp.ne.s32.totalorder %s90, %s92
      %p99 = scmp.eq.s32.totalorder %s33, 1
      %p100 = por %p98, %p99
      %p101 = scmp.ne.s32.totalorder %s92, %s93
      %p102 = scmp.eq.s32.totalorder %s33, 0
      %p103 = por %p101, %p102
      %p104 = scmp.ne.s32.totalorder %s92, %s93
      %p105 = scmp.eq.s32.totalorder %s34, 1
      %p106 = por %p104, %p105
      %p108 = scmp.ne.s32.totalorder %s93, %s107
      %p109 = scmp.eq.s32.totalorder %s34, 0
      %p110 = por %p108, %p109
      %s111 = ssub.s32 %s35, %s47
      %s112 = ssub.s32 %s36, %s43
      %s113 = sor.u32 %s111, %s112
      %p114 = scmp.eq.s32.totalorder %s113, 0
      %s116 = sadd.s32 %s115, 1
      %s117 = scalar_select %p114, %s115, %s116
      %p120 = pneg %p114
      %p121 = scmp.eq.s32.totalorder %s28, 1
      %p122 = por %p120, %p121
      %p123 = scmp.ne.s32.totalorder %s115, %s118
      %p124 = scmp.eq.s32.totalorder %s28, 0
      %p125 = por %p123, %p124
      %p126 = scmp.ne.s32.totalorder %s115, %s118
      %p127 = scmp.eq.s32.totalorder %s33, 1
      %p128 = por %p126, %p127
      %p129 = scmp.ne.s32.totalorder %s118, %s119
      %p130 = scmp.eq.s32.totalorder %s33, 0
      %p131 = por %p129, %p130
      %p132 = scmp.ne.s32.totalorder %s118, %s119
      %p133 = scmp.eq.s32.totalorder %s34, 1
      %p134 = por %p132, %p133
      %p136 = scmp.ne.s32.totalorder %s119, %s135
      %p137 = scmp.eq.s32.totalorder %s34, 0
      %p138 = por %p136, %p137
      %s139 = ssub.s32 %s35, %s47
      %s140 = ssub.s32 %s36, %s43
      %s141 = sor.u32 %s139, %s140
      %p142 = scmp.eq.s32.totalorder %s141, 0
      %s144 = sadd.s32 %s143, 1
      %s145 = scalar_select %p142, %s143, %s144
      %p148 = pneg %p142
      %p149 = scmp.eq.s32.totalorder %s28, 1
      %p150 = por %p148, %p149
      %p151 = scmp.ne.s32.totalorder %s143, %s146
      %p152 = scmp.eq.s32.totalorder %s28, 0
      %p153 = por %p151, %p152
      %p154 = scmp.ne.s32.totalorder %s143, %s146
      %p155 = scmp.eq.s32.totalorder %s33, 1
      %p156 = por %p154, %p155
      %p157 = scmp.ne.s32.totalorder %s146, %s147
      %p158 = scmp.eq.s32.totalorder %s33, 0
      %p159 = por %p157, %p158
      %p160 = scmp.ne.s32.totalorder %s146, %s147
      %p161 = scmp.eq.s32.totalorder %s34, 1
      %p162 = por %p160, %p161
      %p164 = scmp.ne.s32.totalorder %s147, %s163
      %p165 = scmp.eq.s32.totalorder %s34, 0
      %p166 = por %p164, %p165
      %s167 = ssub.s32 %s35, %s47
      %s168 = ssub.s32 %s36, %s43
      %s169 = sor.u32 %s167, %s168
      %p170 = scmp.eq.s32.totalorder %s169, 0
      %s172 = sadd.s32 %s171, 1
      %s173 = scalar_select %p170, %s171, %s172
      %p176 = pneg %p170
      %p177 = scmp.eq.s32.totalorder %s28, 1
      %p178 = por %p176, %p177
      %p179 = scmp.ne.s32.totalorder %s171, %s174
      %p180 = scmp.eq.s32.totalorder %s28, 0
      %p181 = por %p179, %p180
      %p182 = scmp.ne.s32.totalorder %s171, %s174
      %p183 = scmp.eq.s32.totalorder %s33, 1
      %p184 = por %p182, %p183
      %p185 = scmp.ne.s32.totalorder %s174, %s175
      %p186 = scmp.eq.s32.totalorder %s33, 0
      %p187 = por %p185, %p186
      %p188 = scmp.ne.s32.totalorder %s174, %s175
      %p189 = scmp.eq.s32.totalorder %s34, 1
      %p190 = por %p188, %p189
      %p192 = scmp.ne.s32.totalorder %s175, %s191
      %p193 = scmp.eq.s32.totalorder %s34, 0
      %p194 = por %p192, %p193
      %s196 = sadd.s32 %s195, 1
      %p199 = scmp.eq.s32.totalorder %s28, 1
      %p200 = scmp.ne.s32.totalorder %s195, %s197
      %p201 = scmp.eq.s32.totalorder %s28, 0
      %p202 = por %p200, %p201
      %p203 = scmp.ne.s32.totalorder %s195, %s197
      %p204 = scmp.eq.s32.totalorder %s33, 1
      %p205 = por %p203, %p204
      %p206 = scmp.ne.s32.totalorder %s197, %s198
      %p207 = scmp.eq.s32.totalorder %s33, 0
      %p208 = por %p206, %p207
      %p209 = scmp.ne.s32.totalorder %s197, %s198
      %p210 = scmp.eq.s32.totalorder %s34, 1
      %p211 = por %p209, %p210
      %p213 = scmp.ne.s32.totalorder %s198, %s212
      %p214 = scmp.eq.s32.totalorder %s34, 0
      %p215 = por %p213, %p214
      %s217 = sadd.s32 %s216, 1
      %p220 = scmp.eq.s32.totalorder %s28, 1
      %p221 = scmp.ne.s32.totalorder %s216, %s218
      %p222 = scmp.eq.s32.totalorder %s28, 0
      %p223 = por %p221, %p222
      %p224 = scmp.ne.s32.totalorder %s216, %s218
      %p225 = scmp.eq.s32.totalorder %s33, 1
      %p226 = por %p224, %p225
      %p227 = scmp.ne.s32.totalorder %s218, %s219
      %p228 = scmp.eq.s32.totalorder %s33, 0
      %p229 = por %p227, %p228
      %p230 = scmp.ne.s32.totalorder %s218, %s219
      %p231 = scmp.eq.s32.totalorder %s34, 1
      %p232 = por %p230, %p231
      %p234 = scmp.ne.s32.totalorder %s219, %s233
      %p235 = scmp.eq.s32.totalorder %s34, 0
      %p236 = por %p234, %p235
      %s238 = sadd.s32 %s237, 1
      %p241 = scmp.eq.s32.totalorder %s28, 1
      %p242 = scmp.ne.s32.totalorder %s237, %s239
      %p243 = scmp.eq.s32.totalorder %s28, 0
      %p244 = por %p242, %p243
      %p245 = scmp.ne.s32.totalorder %s237, %s239
      %p246 = scmp.eq.s32.totalorder %s33, 1
      %p247 = por %p245, %p246
      %p248 = scmp.ne.s32.totalorder %s239, %s240
      %p249 = scmp.eq.s32.totalorder %s33, 0
      %p250 = por %p248, %p249
      %p251 = scmp.ne.s32.totalorder %s239, %s240
      %p252 = scmp.eq.s32.totalorder %s34, 1
      %p253 = por %p251, %p252
      %p255 = scmp.ne.s32.totalorder %s240, %s254
      %p256 = scmp.eq.s32.totalorder %s34, 0
      %p257 = por %p255, %p256
      %s259 = sadd.s32 %s258, 1
      %p262 = scmp.eq.s32.totalorder %s28, 1
      %p263 = scmp.ne.s32.totalorder %s258, %s260
      %p264 = scmp.eq.s32.totalorder %s28, 0
      %p265 = por %p263, %p264
      %p266 = scmp.ne.s32.totalorder %s258, %s260
      %p267 = scmp.eq.s32.totalorder %s33, 1
      %p268 = por %p266, %p267
      %p269 = scmp.ne.s32.totalorder %s260, %s261
      %p270 = scmp.eq.s32.totalorder %s33, 0
      %p271 = por %p269, %p270
      %p272 = scmp.ne.s32.totalorder %s260, %s261
      %p273 = scmp.eq.s32.totalorder %s34, 1
      %p274 = por %p272, %p273
      %p276 = scmp.ne.s32.totalorder %s261, %s275
      %p277 = scmp.eq.s32.totalorder %s34, 0
      %p278 = por %p276, %p277
      %s279 = ssub.s32 %s35, %s47
      %p280 = scmp.eq.s32.totalorder %s279, 0
      %s282 = sadd.s32 %s281, 1
      %s283 = scalar_select %p280, %s281, %s282
      %p286 = pneg %p280
      %p287 = scmp.eq.s32.totalorder %s28, 1
      %p288 = por %p286, %p287
      %p289 = scmp.ne.s32.totalorder %s281, %s284
      %p290 = scmp.eq.s32.totalorder %s28, 0
      %p291 = por %p289, %p290
      %p292 = scmp.ne.s32.totalorder %s281, %s284
      %p293 = scmp.eq.s32.totalorder %s33, 1
      %p294 = por %p292, %p293
      %p295 = scmp.ne.s32.totalorder %s284, %s285
      %p296 = scmp.eq.s32.totalorder %s33, 0
      %p297 = por %p295, %p296
      %p298 = scmp.ne.s32.totalorder %s284, %s285
      %p299 = scmp.eq.s32.totalorder %s34, 1
      %p300 = por %p298, %p299
      %p302 = scmp.ne.s32.totalorder %s285, %s301
      %p303 = scmp.eq.s32.totalorder %s34, 0
      %p304 = por %p302, %p303
      %s305 = ssub.s32 %s35, %s47
      %p306 = scmp.eq.s32.totalorder %s305, 0
      %s308 = sadd.s32 %s307, 1
      %s309 = scalar_select %p306, %s307, %s308
      %p312 = pneg %p306
      %p313 = scmp.eq.s32.totalorder %s28, 1
      %p314 = por %p312, %p313
      %p315 = scmp.ne.s32.totalorder %s307, %s310
      %p316 = scmp.eq.s32.totalorder %s28, 0
      %p317 = por %p315, %p316
      %p318 = scmp.ne.s32.totalorder %s307, %s310
      %p319 = scmp.eq.s32.totalorder %s33, 1
      %p320 = por %p318, %p319
      %p321 = scmp.ne.s32.totalorder %s310, %s311
      %p322 = scmp.eq.s32.totalorder %s33, 0
      %p323 = por %p321, %p322
      %p324 = scmp.ne.s32.totalorder %s310, %s311
      %p325 = scmp.eq.s32.totalorder %s34, 1
      %p326 = por %p324, %p325
      %p328 = scmp.ne.s32.totalorder %s311, %s327
      %p329 = scmp.eq.s32.totalorder %s34, 0
      %p330 = por %p328, %p329
      %p331 = scmp.le.s32.totalorder 1, %s28
      %p332 = scmp.lt.s32.totalorder %s28, 3
      %p333 = pnand %p331, %p332
      %p334 = pneg %p333
      // Predicated region
      $region9: #{tpu_custom_call.1} parent=5 // pred_check
        _
      $region10: #{tpu_custom_call.1} parent=5 // pred_check_branch
        %336 = sbr.rel (%p333) target = $region12
      $region11: #{tpu_custom_call.1} parent=5 // pred_region
        %s337 = ssub.s32 %s28, 1
        // Predicated region
        $region13: #{tpu_custom_call.1} parent=11 // pred_check
          %p338 = pneg %p61
        $region14: #{tpu_custom_call.1} parent=11 // pred_check_branch
          %340 = sbr.rel (%p338) target = $region16
        $region15: #{tpu_custom_call.1} parent=11 // pred_region
          %s342 = ssub.s32 16, 16
          %343 = vsyncadd [#allocation4], %s342
          %346 = dma.hbm_to_smem %s0, 16, [#allocation2], [#allocation4]
        $region16: #{tpu_custom_call.1} parent=11 // pred_fallthru
          _
        // Predicated region
        $region17: #{tpu_custom_call.1} parent=11 // pred_check
          %p347 = pneg %p82
        $region18: #{tpu_custom_call.1} parent=11 // pred_check_branch
          %349 = sbr.rel (%p347) target = $region20
        $region19: #{tpu_custom_call.1} parent=11 // pred_region
          %s351 = ssub.s32 16, 16
          %352 = vsyncadd [#allocation5], %s351
          %s354 = sshll.u32 %s1, 4
          %s355 = int_to_ptr.vmem [resolvable:$true] %s354
          %357 = dma.vmem_to_smem %s355, 16, [#allocation6], [#allocation5]
        $region20: #{tpu_custom_call.1} parent=11 // pred_fallthru
          _
        // Predicated region
        $region21: #{tpu_custom_call.1} parent=11 // pred_check
          %p358 = pneg %p103
        $region22: #{tpu_custom_call.1} parent=11 // pred_check_branch
          %360 = sbr.rel (%p358) target = $region24
        $region23: #{tpu_custom_call.1} parent=11 // pred_region
          %s362 = ssub.s32 16, 16
          %363 = vsyncadd [#allocation8], %s362
          %s365 = sshll.u32 %s2, 4
          %s366 = int_to_ptr.vmem [resolvable:$true] %s365
          %368 = dma.vmem_to_smem %s366, 16, [#allocation7], [#allocation8]
        $region24: #{tpu_custom_call.1} parent=11 // pred_fallthru
          _
        // Predicated region
        $region25: #{tpu_custom_call.1} parent=11 // pred_check
          %p369 = pneg %p208
        $region26: #{tpu_custom_call.1} parent=11 // pred_check_branch
          %371 = sbr.rel (%p369) target = $region28
        $region27: #{tpu_custom_call.1} parent=11 // pred_region
          %s373 = ssub.s32 2048, 2048
          %374 = vsyncadd [#allocation14], %s373
          %s375 = sshll.u32 [#allocation13], 4
          %s376 = int_to_ptr.vmem [resolvable:$true] %s375
          %381 = dma.hbm_to_vmem [thread:$0]  %s6, 2048, %s376, [#allocation14], 128, 128, 8
        $region28: #{tpu_custom_call.1} parent=11 // pred_fallthru
          _
        // Predicated region
        $region29: #{tpu_custom_call.1} parent=11 // pred_check
          %p382 = pneg %p229
        $region30: #{tpu_custom_call.1} parent=11 // pred_check_branch
          %384 = sbr.rel (%p382) target = $region32
        $region31: #{tpu_custom_call.1} parent=11 // pred_region
          _
        $region32: #{tpu_custom_call.1} parent=11 // pred_fallthru
          _
        // Predicated region
        $region33: #{tpu_custom_call.1} parent=11 // pred_check
          %p385 = pneg %p250
        $region34: #{tpu_custom_call.1} parent=11 // pred_check_branch
          %387 = sbr.rel (%p385) target = $region36
        $region35: #{tpu_custom_call.1} parent=11 // pred_region
          %s389 = ssub.s32 4096, 4096
          %390 = vsyncadd [#allocation14], %s389
          %s391 = sshll.u32 [#allocation15], 4
          %s392 = int_to_ptr.vmem [resolvable:$true] %s391
          %397 = dma.hbm_to_vmem [thread:$0]  %s8, 4096, %s392, [#allocation14], 128, 128, 8
        $region36: #{tpu_custom_call.1} parent=11 // pred_fallthru
          _
        // Predicated region
        $region37: #{tpu_custom_call.1} parent=11 // pred_check
          %p398 = pneg %p271
        $region38: #{tpu_custom_call.1} parent=11 // pred_check_branch
          %400 = sbr.rel (%p398) target = $region40
        $region39: #{tpu_custom_call.1} parent=11 // pred_region
          _
        $region40: #{tpu_custom_call.1} parent=11 // pred_fallthru
          _
      $region12: #{tpu_custom_call.1} parent=5 // pred_fallthru
        _
      %p401 = scmp.lt.s32.totalorder %s28, 2
      // Predicated region
      $region41: #{tpu_custom_call.1} parent=5 // pred_check
        %p402 = pneg %p401
      $region42: #{tpu_custom_call.1} parent=5 // pred_check_branch
        %404 = sbr.rel (%p402) target = $region44
      $region43: #{tpu_custom_call.1} parent=5 // pred_region
        // Predicated region
        $region45: #{tpu_custom_call.1} parent=43 // pred_check
          %p405 = pneg %p125
        $region46: #{tpu_custom_call.1} parent=43 // pred_check_branch
          %407 = sbr.rel (%p405) target = $region48
        $region47: #{tpu_custom_call.1} parent=43 // pred_region
          %s408 = sand.u32 %s115, 1
          %s409 = scalar_lea.sflag [#allocation3], %s408
          %s410 = sand.u32 %s115, 1
          %s411 = smul.addr %s410, 16
          %s412 = scalar_lea.vmem [#allocation9], %s411
          %s413 = smul.u32 2, %s36
          %s415 = ssub.s32 256, 256
          %416 = vsyncadd %s409, %s415
          %s417 = smul.addr %s35, 2
          %s418 = sadd.s32 %s413, %s417
          %s419 = smul.addr %s418, 128
          %s420 = scalar_lea.hbm %s3, %s419
          %s421 = sshll.u32 %s412, 4
          %s422 = int_to_ptr.vmem [resolvable:$true] %s421
          %427 = dma.hbm_to_vmem [thread:$0]  %s420, 256, %s422, %s409, 128, 128, 8
        $region48: #{tpu_custom_call.1} parent=43 // pred_fallthru
          _
        // Predicated region
        $region49: #{tpu_custom_call.1} parent=43 // pred_check
          %p428 = pneg %p153
        $region50: #{tpu_custom_call.1} parent=43 // pred_check_branch
          %430 = sbr.rel (%p428) target = $region52
        $region51: #{tpu_custom_call.1} parent=43 // pred_region
          %s431 = sand.u32 %s28, 1
          %s432 = scalar_lea.sflag [#allocation11], %s431
          %s433 = sand.u32 %s143, 1
          %s434 = smul.addr %s433, 16
          %s435 = scalar_lea.vmem [#allocation10], %s434
          %s436 = smul.u32 2, %s36
          %s438 = ssub.s32 256, 256
          %439 = vsyncadd %s432, %s438
          %s440 = smul.addr %s35, 2
          %s441 = sadd.s32 %s436, %s440
          %s442 = smul.addr %s441, 128
          %s443 = scalar_lea.hbm %s4, %s442
          %s444 = sshll.u32 %s435, 4
          %s445 = int_to_ptr.vmem [resolvable:$true] %s444
          %450 = dma.hbm_to_vmem [thread:$0]  %s443, 256, %s445, %s432, 128, 128, 8
        $region52: #{tpu_custom_call.1} parent=43 // pred_fallthru
          _
        // Predicated region
        $region53: #{tpu_custom_call.1} parent=43 // pred_check
          %p451 = pneg %p181
        $region54: #{tpu_custom_call.1} parent=43 // pred_check_branch
          %453 = sbr.rel (%p451) target = $region56
        $region55: #{tpu_custom_call.1} parent=43 // pred_region
          %s454 = sand.u32 %s28, 1
          %s455 = scalar_lea.sflag [#allocation11], %s454
          %s456 = sand.u32 %s171, 1
          %s457 = smul.addr %s456, 16
          %s458 = scalar_lea.vmem [#allocation12], %s457
          %s459 = smul.u32 2, %s36
          %s461 = ssub.s32 256, 256
          %462 = vsyncadd %s455, %s461
          %s463 = smul.addr %s35, 2
          %s464 = sadd.s32 %s459, %s463
          %s465 = smul.addr %s464, 128
          %s466 = scalar_lea.hbm %s5, %s465
          %s467 = sshll.u32 %s458, 4
          %s468 = int_to_ptr.vmem [resolvable:$true] %s467
          %473 = dma.hbm_to_vmem [thread:$0]  %s466, 256, %s468, %s455, 128, 128, 8
        $region56: #{tpu_custom_call.1} parent=43 // pred_fallthru
          _
      $region44: #{tpu_custom_call.1} parent=5 // pred_fallthru
        _
      %p474 = scmp.le.s32.totalorder 1, %s28
      %p475 = scmp.lt.s32.totalorder %s28, 3
      %p476 = pnand %p474, %p475
      %p477 = pneg %p476
      // Predicated region
      $region57: #{tpu_custom_call.1} parent=5 // pred_check
        _
      $region58: #{tpu_custom_call.1} parent=5 // pred_check_branch
        %479 = sbr.rel (%p476) target = $region60
      $region59: #{tpu_custom_call.1} parent=5 // pred_region
        %s480 = ssub.s32 %s28, 1
        // Predicated region
        $region61: #{tpu_custom_call.1} parent=59 // pred_check
          %p481 = pneg %p61
        $region62: #{tpu_custom_call.1} parent=59 // pred_check_branch
          %483 = sbr.rel (%p481) target = $region64
        $region63: #{tpu_custom_call.1} parent=59 // pred_region
          %484 = dma.done [#allocation4], 16
        $region64: #{tpu_custom_call.1} parent=59 // pred_fallthru
          _
        // Predicated region
        $region65: #{tpu_custom_call.1} parent=59 // pred_check
          %p485 = pneg %p82
        $region66: #{tpu_custom_call.1} parent=59 // pred_check_branch
          %487 = sbr.rel (%p485) target = $region68
        $region67: #{tpu_custom_call.1} parent=59 // pred_region
          %488 = dma.done [#allocation5], 16
        $region68: #{tpu_custom_call.1} parent=59 // pred_fallthru
          _
        // Predicated region
        $region69: #{tpu_custom_call.1} parent=59 // pred_check
          %p489 = pneg %p103
        $region70: #{tpu_custom_call.1} parent=59 // pred_check_branch
          %491 = sbr.rel (%p489) target = $region72
        $region71: #{tpu_custom_call.1} parent=59 // pred_region
          %492 = dma.done [#allocation8], 16
        $region72: #{tpu_custom_call.1} parent=59 // pred_fallthru
          _
        %s493 = sand.u32 %s118, 1
        %s494 = scalar_lea.sflag [#allocation3], %s493
        %s495 = sand.u32 %s118, 1
        %s496 = smul.addr %s495, 16
        %s497 = scalar_lea.vmem [#allocation9], %s496
        // Predicated region
        $region73: #{tpu_custom_call.1} parent=59 // pred_check
          %p498 = pneg %p131
        $region74: #{tpu_custom_call.1} parent=59 // pred_check_branch
          %500 = sbr.rel (%p498) target = $region76
        $region75: #{tpu_custom_call.1} parent=59 // pred_region
          %501 = dma.done %s494, 256
        $region76: #{tpu_custom_call.1} parent=59 // pred_fallthru
          _
        %s502 = sand.u32 %s33, 1
        %s503 = scalar_lea.sflag [#allocation11], %s502
        %s504 = sand.u32 %s146, 1
        %s505 = smul.addr %s504, 16
        %s506 = scalar_lea.vmem [#allocation10], %s505
        // Predicated region
        $region77: #{tpu_custom_call.1} parent=59 // pred_check
          %p507 = pneg %p159
        $region78: #{tpu_custom_call.1} parent=59 // pred_check_branch
          %509 = sbr.rel (%p507) target = $region80
        $region79: #{tpu_custom_call.1} parent=59 // pred_region
          %510 = dma.done %s503, 256
        $region80: #{tpu_custom_call.1} parent=59 // pred_fallthru
          _
        %s511 = sand.u32 %s33, 1
        %s512 = scalar_lea.sflag [#allocation11], %s511
        %s513 = sand.u32 %s174, 1
        %s514 = smul.addr %s513, 16
        %s515 = scalar_lea.vmem [#allocation12], %s514
        // Predicated region
        $region81: #{tpu_custom_call.1} parent=59 // pred_check
          %p516 = pneg %p187
        $region82: #{tpu_custom_call.1} parent=59 // pred_check_branch
          %518 = sbr.rel (%p516) target = $region84
        $region83: #{tpu_custom_call.1} parent=59 // pred_region
          %519 = dma.done %s512, 256
        $region84: #{tpu_custom_call.1} parent=59 // pred_fallthru
          _
        // Predicated region
        $region85: #{tpu_custom_call.1} parent=59 // pred_check
          %p520 = pneg %p208
        $region86: #{tpu_custom_call.1} parent=59 // pred_check_branch
          %522 = sbr.rel (%p520) target = $region88
        $region87: #{tpu_custom_call.1} parent=59 // pred_region
          %523 = dma.done [#allocation14], 2048
        $region88: #{tpu_custom_call.1} parent=59 // pred_fallthru
          _
        // Predicated region
        $region89: #{tpu_custom_call.1} parent=59 // pred_check
          %p524 = pneg %p250
        $region90: #{tpu_custom_call.1} parent=59 // pred_check_branch
          %526 = sbr.rel (%p524) target = $region92
        $region91: #{tpu_custom_call.1} parent=59 // pred_region
          %527 = dma.done [#allocation14], 4096
        $region92: #{tpu_custom_call.1} parent=59 // pred_fallthru
          _
        %528 = sfence
        %p529 = pneg %p61
        %p530 = pneg %p58
        %p531 = pneg %p82
        %p532 = pneg %p79
        %p533 = pneg %p103
        %p534 = pneg %p100
        %s535 = sand.u32 %s118, 1
        %s536 = scalar_lea.sflag [#allocation3], %s535
        %s537 = sand.u32 %s118, 1
        %s538 = smul.addr %s537, 16
        %s539 = scalar_lea.vmem [#allocation9], %s538
        %p540 = pneg %p131
        %p541 = pneg %p128
        %s542 = sand.u32 %s33, 1
        %s543 = scalar_lea.sflag [#allocation11], %s542
        %s544 = sand.u32 %s146, 1
        %s545 = smul.addr %s544, 16
        %s546 = scalar_lea.vmem [#allocation10], %s545
        %p547 = pneg %p159
        %p548 = pneg %p156
        %s549 = sand.u32 %s33, 1
        %s550 = scalar_lea.sflag [#allocation11], %s549
        %s551 = sand.u32 %s174, 1
        %s552 = smul.addr %s551, 16
        %s553 = scalar_lea.vmem [#allocation12], %s552
        %p554 = pneg %p187
        %p555 = pneg %p184
        %p556 = pneg %p208
        %p557 = pneg %p205
        %p558 = pneg %p229
        %p559 = pneg %p226
        %p560 = pneg %p250
        %p561 = pneg %p247
        %p562 = pneg %p271
        %p563 = pneg %p268
        %p564 = pneg %p297
        %p565 = pneg %p294
        %p566 = scmp.lt.s32.totalorder %s37, 1
        %s567 = scalar_select %p566, %s37, 1
        %s568 = scalar_lea.vmem %s10, %s567
        %p569 = pneg %p323
        %p570 = pneg %p320
        %p571 = scmp.lt.s32.totalorder %s37, 1
        %s572 = scalar_select %p571, %s37, 1
        %s573 = scalar_lea.vmem %s11, %s572
        %s574 = smul.u32 2, %s38
        %s575 = smul.u32 2, %s38
        %s576 = smul.u32 2, %s38
        %p577 = scmp.lt.s32.totalorder %s37, 1
        %s578 = scalar_select %p577, %s37, 1
        %s579 = scalar_lea.vmem %s10, %s578
        %p580 = scmp.lt.s32.totalorder %s37, 1
        %s581 = scalar_select %p580, %s37, 1
        %s582 = scalar_lea.vmem %s11, %s581
        %s583 = sld [smem:[#allocation2 + %s37]]
        %s584 = sld [smem:[#allocation6 + %s37]]
        %s585 = sld [smem:[#allocation7 + %s37]]
        %p586 = scmp.eq.s32.totalorder %s38, 0
        // Predicated region
        $region93: #{tpu_custom_call.1} parent=59 // pred_check
          %p587 = pneg %p586
        $region94: #{tpu_custom_call.1} parent=59 // pred_check_branch
          %589 = sbr.rel (%p587) target = $region96
        $region95: #{tpu_custom_call.1} parent=59 // pred_region
          %vm590 = vcmask 0
          %591 = vst.msk [vmem:[%s579] sm:$0x1] %vm590, 0.0
          %592 = vst.msk [vmem:[%s582] sm:$0x1] %vm590, 0.0
        $region96: #{tpu_custom_call.1} parent=59 // pred_fallthru
          _
        %v593 = vld [vmem:[%s497] sm:$0xff]
        %v594 = vld [vmem:[%s497 + $0x8] sm:$0xff]
        %v595 = vld [vmem:[%s506] sm:$0xff]
        %v596 = vld [vmem:[%s506 + $0x8] sm:$0xff]
        %v597 = vld [vmem:[%s515] sm:$0xff]
        %v598 = vld [vmem:[%s515 + $0x8] sm:$0xff]
        %v599 = vld [vmem:[#allocation13] sm:$0xff]
        %v600 = vld [vmem:[#allocation13 + $0x8] sm:$0xff]
        %v601 = vld [vmem:[#allocation13 + $0x10] sm:$0xff]
        %v602 = vld [vmem:[#allocation13 + $0x18] sm:$0xff]
        %v603 = vld [vmem:[#allocation13 + $0x20] sm:$0xff]
        %v604 = vld [vmem:[#allocation13 + $0x28] sm:$0xff]
        %v605 = vld [vmem:[#allocation13 + $0x30] sm:$0xff]
        %v606 = vld [vmem:[#allocation13 + $0x38] sm:$0xff]
        %v607 = vld [vmem:[#allocation13 + $0x40] sm:$0xff]
        %v608 = vld [vmem:[#allocation13 + $0x48] sm:$0xff]
        %v609 = vld [vmem:[#allocation13 + $0x50] sm:$0xff]
        %v610 = vld [vmem:[#allocation13 + $0x58] sm:$0xff]
        %v611 = vld [vmem:[#allocation13 + $0x60] sm:$0xff]
        %v612 = vld [vmem:[#allocation13 + $0x68] sm:$0xff]
        %v613 = vld [vmem:[#allocation13 + $0x70] sm:$0xff]
        %v614 = vld [vmem:[#allocation13 + $0x78] sm:$0xff]
        %v615 = vld [vmem:[%s7] sm:$0x1]
        %v617 = vlaneseq
        %v618 = vshrl.u32 %v617, 7
        %v619 = vsub.s32 0, %v618
        %v620 = vrot.slane %v615, %v619
        %622 = vmatprep.subr.mxu0 0.0
        %623 = vmatpush1.msra.mxu0 %v599
        %624 = vmatprep.subr.mxu0 0.0
        %625 = vmatpush1.msra.mxu0 %v600
        %626 = vmatprep.subr.mxu0 0.0
        %627 = vmatpush1.msra.mxu0 %v601
        %628 = vmatprep.subr.mxu0 0.0
        %629 = vmatpush1.msra.mxu0 %v602
        %630 = vmatprep.subr.mxu0 0.0
        %631 = vmatpush1.msra.mxu0 %v603
        %632 = vmatprep.subr.mxu0 0.0
        %633 = vmatpush1.msra.mxu0 %v604
        %634 = vmatprep.subr.mxu0 0.0
        %635 = vmatpush1.msra.mxu0 %v605
        %636 = vmatprep.subr.mxu0 0.0
        %637 = vmatpush1.msra.mxu0 %v606
        %638 = vmatprep.subr.mxu0 0.0
        %639 = vmatpush1.msra.mxu0 %v607
        %640 = vmatprep.subr.mxu0 0.0
        %641 = vmatpush1.msra.mxu0 %v608
        %642 = vmatprep.subr.mxu0 0.0
        %643 = vmatpush1.msra.mxu0 %v609
        %644 = vmatprep.subr.mxu0 0.0
        %645 = vmatpush1.msra.mxu0 %v610
        %646 = vmatprep.subr.mxu0 0.0
        %647 = vmatpush1.msra.mxu0 %v611
        %648 = vmatprep.subr.mxu0 0.0
        %649 = vmatpush1.msra.mxu0 %v612
        %650 = vmatprep.subr.mxu0 0.0
        %651 = vmatpush1.msra.mxu0 %v613
        %652 = vmatprep.subr.mxu0 0.0
        %653 = vmatpush1.msra.mxu0 %v614
        %654 = vmatprep.subr.mxu0 0.0
        %655 = vmatpush1.msra.mxu0 0.0
        %656 = vmatprep.subr.mxu0 0.0
        %657 = vmatpush1.msra.mxu0 0.0
        %658 = vmatprep.subr.mxu0 0.0
        %659 = vmatpush1.msra.mxu0 0.0
        %660 = vmatprep.subr.mxu0 0.0
        %661 = vmatpush1.msra.mxu0 0.0
        %662 = vmatprep.subr.mxu0 0.0
        %663 = vmatpush1.msra.mxu0 0.0
        %664 = vmatprep.subr.mxu0 0.0
        %665 = vmatpush1.msra.mxu0 0.0
        %666 = vmatprep.subr.mxu0 0.0
        %667 = vmatpush1.msra.mxu0 0.0
        %668 = vmatprep.subr.mxu0 0.0
        %669 = vmatpush1.msra.mxu0 0.0
        %670 = vmatprep.subr.mxu0 0.0
        %671 = vmatpush1.msra.mxu0 0.0
        %672 = vmatprep.subr.mxu0 0.0
        %673 = vmatpush1.msra.mxu0 0.0
        %674 = vmatprep.subr.mxu0 0.0
        %675 = vmatpush1.msra.mxu0 0.0
        %676 = vmatprep.subr.mxu0 0.0
        %677 = vmatpush1.msra.mxu0 0.0
        %678 = vmatprep.subr.mxu0 0.0
        %679 = vmatpush1.msra.mxu0 0.0
        %680 = vmatprep.subr.mxu0 0.0
        %681 = vmatpush1.msra.mxu0 0.0
        %682 = vmatprep.subr.mxu0 0.0
        %683 = vmatpush1.msra.mxu0 0.0
        %684 = vmatprep.subr.mxu0 0.0
        %685 = vmatpush1.msra.mxu0 0.0
        %686 = vmatprep.mubr.f32.mxu0 0.0
        %687 = vmatmul.mubr.f32.gmra.mrb[0].mxu0 %v593
        %v688 = vpop.f32.mrb[0].mxu0
        %v689 = vadd.f32 %v620, %v688
        %v690 = vpop.f32.mrb[0].mxu0
        %691 = vmatprep.mubr.f32.mxu0 0.0
        %692 = vmatmul.mubr.f32.gmra.mrb[0].mxu0 %v594
        %v693 = vpop.f32.mrb[0].mxu0
        %v694 = vadd.f32 %v620, %v693
        %v695 = vpop.f32.mrb[0].mxu0
        %696 = vdwg.mxu0
        %v697 = vtanh.pop %v689
        %v698 = vtanh.pop %v694
        %v699 = vstv %s584
        %v700 = vmul.f32 %v697, %v699
        %v701 = vmul.f32 %v698, %v699
        %s702 = smul.f32 %s583, 0.999999
        %s703 = ssub.f32 1.0, %s702
        %v704 = vstv %s703
        %v705 = vmul.f32 %v704, %v597
        %v706 = vmul.f32 %v704, %v598
        %v707 = vstv %s583
        %v708 = vmul.f32 %v707, %v595
        %v709 = vmul.f32 %v707, %v596
        %v710 = vadd.f32 %v705, %v708
        %v711 = vadd.f32 %v706, %v709
        %v712 = vmul.f32 %v597, 0.999999
        %v713 = vmul.f32 %v598, 0.999999
        %v714 = vsub.f32 %v595, %v712
        %v715 = vsub.f32 %v596, %v713
        %v716 = vld [vmem:[#allocation15] sm:$0xff]
        %v717 = vld [vmem:[#allocation15 + $0x8] sm:$0xff]
        %v718 = vld [vmem:[#allocation15 + $0x10] sm:$0xff]
        %v719 = vld [vmem:[#allocation15 + $0x18] sm:$0xff]
        %v720 = vld [vmem:[#allocation15 + $0x20] sm:$0xff]
        %v721 = vld [vmem:[#allocation15 + $0x28] sm:$0xff]
        %v722 = vld [vmem:[#allocation15 + $0x30] sm:$0xff]
        %v723 = vld [vmem:[#allocation15 + $0x38] sm:$0xff]
        %v724 = vld [vmem:[#allocation15 + $0x40] sm:$0xff]
        %v725 = vld [vmem:[#allocation15 + $0x48] sm:$0xff]
        %v726 = vld [vmem:[#allocation15 + $0x50] sm:$0xff]
        %v727 = vld [vmem:[#allocation15 + $0x58] sm:$0xff]
        %v728 = vld [vmem:[#allocation15 + $0x60] sm:$0xff]
        %v729 = vld [vmem:[#allocation15 + $0x68] sm:$0xff]
        %v730 = vld [vmem:[#allocation15 + $0x70] sm:$0xff]
        %v731 = vld [vmem:[#allocation15 + $0x78] sm:$0xff]
        %v732 = vld [vmem:[#allocation15 + $0x80] sm:$0xff]
        %v733 = vld [vmem:[#allocation15 + $0x88] sm:$0xff]
        %v734 = vld [vmem:[#allocation15 + $0x90] sm:$0xff]
        %v735 = vld [vmem:[#allocation15 + $0x98] sm:$0xff]
        %v736 = vld [vmem:[#allocation15 + $0xa0] sm:$0xff]
        %v737 = vld [vmem:[#allocation15 + $0xa8] sm:$0xff]
        %v738 = vld [vmem:[#allocation15 + $0xb0] sm:$0xff]
        %v739 = vld [vmem:[#allocation15 + $0xb8] sm:$0xff]
        %v740 = vld [vmem:[#allocation15 + $0xc0] sm:$0xff]
        %v741 = vld [vmem:[#allocation15 + $0xc8] sm:$0xff]
        %v742 = vld [vmem:[#allocation15 + $0xd0] sm:$0xff]
        %v743 = vld [vmem:[#allocation15 + $0xd8] sm:$0xff]
        %v744 = vld [vmem:[#allocation15 + $0xe0] sm:$0xff]
        %v745 = vld [vmem:[#allocation15 + $0xe8] sm:$0xff]
        %v746 = vld [vmem:[#allocation15 + $0xf0] sm:$0xff]
        %v747 = vld [vmem:[#allocation15 + $0xf8] sm:$0xff]
        %v748 = vld [vmem:[%s9] sm:$0x1]
        %v750 = vlaneseq
        %v751 = vshrl.u32 %v750, 7
        %v752 = vsub.s32 0, %v751
        %v753 = vrot.slane %v748, %v752
        %755 = vmatprep.subr.mxu0 0.0
        %756 = vmatpush1.msra.mxu0 %v716
        %757 = vmatprep.subr.mxu0 0.0
        %758 = vmatpush1.msra.mxu0 %v717
        %759 = vmatprep.subr.mxu0 0.0
        %760 = vmatpush1.msra.mxu0 %v718
        %761 = vmatprep.subr.mxu0 0.0
        %762 = vmatpush1.msra.mxu0 %v719
        %763 = vmatprep.subr.mxu0 0.0
        %764 = vmatpush1.msra.mxu0 %v720
        %765 = vmatprep.subr.mxu0 0.0
        %766 = vmatpush1.msra.mxu0 %v721
        %767 = vmatprep.subr.mxu0 0.0
        %768 = vmatpush1.msra.mxu0 %v722
        %769 = vmatprep.subr.mxu0 0.0
        %770 = vmatpush1.msra.mxu0 %v723
        %771 = vmatprep.subr.mxu0 0.0
        %772 = vmatpush1.msra.mxu0 %v724
        %773 = vmatprep.subr.mxu0 0.0
        %774 = vmatpush1.msra.mxu0 %v725
        %775 = vmatprep.subr.mxu0 0.0
        %776 = vmatpush1.msra.mxu0 %v726
        %777 = vmatprep.subr.mxu0 0.0
        %778 = vmatpush1.msra.mxu0 %v727
        %779 = vmatprep.subr.mxu0 0.0
        %780 = vmatpush1.msra.mxu0 %v728
        %781 = vmatprep.subr.mxu0 0.0
        %782 = vmatpush1.msra.mxu0 %v729
        %783 = vmatprep.subr.mxu0 0.0
        %784 = vmatpush1.msra.mxu0 %v730
        %785 = vmatprep.subr.mxu0 0.0
        %786 = vmatpush1.msra.mxu0 %v731
        %787 = vmatprep.subr.mxu0 0.0
        %788 = vmatpush1.msra.mxu0 %v732
        %789 = vmatprep.subr.mxu0 0.0
        %790 = vmatpush1.msra.mxu0 %v733
        %791 = vmatprep.subr.mxu0 0.0
        %792 = vmatpush1.msra.mxu0 %v734
        %793 = vmatprep.subr.mxu0 0.0
        %794 = vmatpush1.msra.mxu0 %v735
        %795 = vmatprep.subr.mxu0 0.0
        %796 = vmatpush1.msra.mxu0 %v736
        %797 = vmatprep.subr.mxu0 0.0
        %798 = vmatpush1.msra.mxu0 %v737
        %799 = vmatprep.subr.mxu0 0.0
        %800 = vmatpush1.msra.mxu0 %v738
        %801 = vmatprep.subr.mxu0 0.0
        %802 = vmatpush1.msra.mxu0 %v739
        %803 = vmatprep.subr.mxu0 0.0
        %804 = vmatpush1.msra.mxu0 %v740
        %805 = vmatprep.subr.mxu0 0.0
        %806 = vmatpush1.msra.mxu0 %v741
        %807 = vmatprep.subr.mxu0 0.0
        %808 = vmatpush1.msra.mxu0 %v742
        %809 = vmatprep.subr.mxu0 0.0
        %810 = vmatpush1.msra.mxu0 %v743
        %811 = vmatprep.subr.mxu0 0.0
        %812 = vmatpush1.msra.mxu0 %v744
        %813 = vmatprep.subr.mxu0 0.0
        %814 = vmatpush1.msra.mxu0 %v745
        %815 = vmatprep.subr.mxu0 0.0
        %816 = vmatpush1.msra.mxu0 %v746
        %817 = vmatprep.subr.mxu0 0.0
        %818 = vmatpush1.msra.mxu0 %v747
        %819 = vmatprep.mubr.f32.mxu0 %v700
        %820 = vmatmul.mubr.f32.gmra.mrb[0].mxu0 %v710
        %v821 = vpop.f32.mrb[0].mxu0
        %v822 = vadd.f32 %v753, %v821
        %v823 = vpop.f32.mrb[0].mxu0
        %824 = vmatprep.mubr.f32.mxu0 %v701
        %825 = vmatmul.mubr.f32.gmra.mrb[0].mxu0 %v711
        %v826 = vpop.f32.mrb[0].mxu0
        %v827 = vadd.f32 %v753, %v826
        %v828 = vpop.f32.mrb[0].mxu0
        %829 = vdwg.mxu0
        %v830 = vlaneseq
        %v831 = vshrl.u32 %v830, 7
        %v832 = vadd.s32 %v831, 8
        %s833 = smul.u32 %s38, 16
        %v834 = vstv %s833
        %v835 = vadd.s32 %v831, %v834
        %v836 = vadd.s32 %v832, %v834
        %v837 = vstv %s585
        %vm838 = vcmp.lt.s32.totalorder %v835, %v837
        %vm839 = vcmp.lt.s32.totalorder %v836, %v837
        %v840 = vsel %vm838, 1, 0
        %v841 = vsel %vm839, 1, 0
        %v842 = vcvt.s32.f32 %v840
        %v843 = vcvt.s32.f32 %v841
        %v844 = vld [vmem:[%s579] sm:$0x1]
        %v845 = vsub.f32 %v822, %v714
        %v846 = vsub.f32 %v827, %v715
        %v847 = vand.u32 2147483647, %v845
        %v848 = vand.u32 2147483647, %v846
        %v849 = vmul.f32 %v847, %v842
        %v850 = vmul.f32 %v848, %v843
        %v851 = vadd.f32 %v849, %v850
        %852 = vadd.xlane.f32.xlu0 %v851
        %v853 = vpop.xlane.xlu0 %852
        %v854 = vrot.slane %v853, 4
        %v855 = vadd.f32 %v853, %v854
        %v856 = vrot.slane %v855, 2
        %v857 = vadd.f32 %v855, %v856
        %v858 = vrot.slane %v857, 1
        %v859 = vadd.f32 %v857, %v858
        %s860 = vtos %v859
        %v861 = vstv %s860
        %v862 = vadd.f32 %v844, %v861
        %vm863 = vcmask 0
        %864 = vst.msk [vmem:[%s579] sm:$0x1] %vm863, %v862
        %v865 = vld [vmem:[%s582] sm:$0x1]
        %s866 = ssub.s32 %s585, %s833
        %p867 = scmp.gt.s32.totalorder %s866, 0
        %s868 = scalar_select %p867, %s866, 0
        %p869 = scmp.lt.s32.totalorder %s868, 16
        %s870 = scalar_select %p869, %s868, 16
        %s871 = scvt.s32.f32 %s870
        %v872 = vstv %s871
        %v873 = vadd.f32 %v865, %v872
        %874 = vst.msk [vmem:[%s582] sm:$0x1] %vm863, %v873
        %p875 = scmp.lt.s32.totalorder %s37, 1
        %s876 = scalar_select %p875, %s37, 1
        %s877 = scalar_lea.vmem %s10, %s876
        %p878 = scmp.lt.s32.totalorder %s37, 1
        %s879 = scalar_select %p878, %s37, 1
        %s880 = scalar_lea.vmem %s11, %s879
        // Predicated region
        $region97: #{tpu_custom_call.1} parent=59 // pred_check
          %p881 = pneg %p294
        $region98: #{tpu_custom_call.1} parent=59 // pred_check_branch
          %883 = sbr.rel (%p881) target = $region100
        $region99: #{tpu_custom_call.1} parent=59 // pred_region
          _
        $region100: #{tpu_custom_call.1} parent=59 // pred_fallthru
          _
        // Predicated region
        $region101: #{tpu_custom_call.1} parent=59 // pred_check
          %p884 = pneg %p320
        $region102: #{tpu_custom_call.1} parent=59 // pred_check_branch
          %886 = sbr.rel (%p884) target = $region104
        $region103: #{tpu_custom_call.1} parent=59 // pred_region
          _
        $region104: #{tpu_custom_call.1} parent=59 // pred_fallthru
          _
      $region60: #{tpu_custom_call.1} parent=5 // pred_fallthru
        _
      %p887 = scmp.le.s32.totalorder 2, %s28
      // Predicated region
      $region105: #{tpu_custom_call.1} parent=5 // pred_check
        %p888 = pneg %p887
      $region106: #{tpu_custom_call.1} parent=5 // pred_check_branch
        %890 = sbr.rel (%p888) target = $region108
      $region107: #{tpu_custom_call.1} parent=5 // pred_region
        %s891 = ssub.s32 %s28, 2
        // Predicated region
        $region109: #{tpu_custom_call.1} parent=107 // pred_check
          %p892 = pneg %p300
        $region110: #{tpu_custom_call.1} parent=107 // pred_check_branch
          %894 = sbr.rel (%p892) target = $region112
        $region111: #{tpu_custom_call.1} parent=107 // pred_region
          %p895 = scmp.lt.s32.totalorder %s39, 1
          %s896 = scalar_select %p895, %s39, 1
          %s897 = scalar_lea.vmem %s10, %s896
        $region112: #{tpu_custom_call.1} parent=107 // pred_fallthru
          _
        // Predicated region
        $region113: #{tpu_custom_call.1} parent=107 // pred_check
          %p898 = pneg %p326
        $region114: #{tpu_custom_call.1} parent=107 // pred_check_branch
          %900 = sbr.rel (%p898) target = $region116
        $region115: #{tpu_custom_call.1} parent=107 // pred_region
          %p901 = scmp.lt.s32.totalorder %s39, 1
          %s902 = scalar_select %p901, %s39, 1
          %s903 = scalar_lea.vmem %s11, %s902
        $region116: #{tpu_custom_call.1} parent=107 // pred_fallthru
          _
      $region108: #{tpu_custom_call.1} parent=5 // pred_fallthru
        _
    $region6: #{tpu_custom_call.1} parent=1 // loop_footer
      %s32 = sadd.s32 1, %s28
    $region7: #{tpu_custom_call.1} parent=1 // loop_footer_branch
      %27 = sbr.rel target = $region3
    $region8: #{tpu_custom_call.1} parent=1 // loop_exit
      _
    %904 = vsyncpa [#allocation3], 1
    %s905 = scalar_lea.sflag [#allocation3], 1
    %906 = vsyncpa %s905, 1
    %907 = vsyncpa [#allocation11], 1
    %s908 = scalar_lea.sflag [#allocation11], 1
    %909 = vsyncpa %s908, 1
    %910 = vsyncpa [#allocation14], 1
    %911 = vsyncpa [#allocation4], 1
    %s912 = scalar_lea.sflag [#allocation4], 1
    %913 = vsyncpa %s912, 1
    %914 = vsyncpa [#allocation5], 1
    %s915 = scalar_lea.sflag [#allocation5], 1
    %916 = vsyncpa %s915, 1
    %917 = vsyncpa [#allocation8], 1

</llo_original>
